<compile_context>
chip_gen: v5e
topology: v5e:2x2
jax: 0.10.0
libtpu: 0.0.40
codegen_flags: <defaults>
</compile_context>

<pallas_src>
import functools

import numpy as np
import jax
import jax.numpy as jnp
from jax import lax
from jax.experimental import pallas as pl
from jax.experimental.pallas import tpu as pltpu


# -----------------------------------------------------------------------------
# Pallas kernel: fused transposed K|V projection + scores + softmax + event mask
# -----------------------------------------------------------------------------
def fused_kv_events_kernel(xT_ref, wT_ref, b_ref, rh_ref, vT_ref, ev_ref, *, A, L):
    xT = xT_ref[0]                                    # (H, L)  bf16, lane-dense load
    wT = wT_ref[...]                                  # (2A, H) bf16
    # kvT = relu(w_kv^T @ x^T + b): (2A, L), bf16 MXU inputs, f32 accumulation.
    kvT = jnp.dot(wT, xT, preferred_element_type=jnp.float32) + b_ref[...]
    kvT = jnp.maximum(kvT, 0.0)

    # V half, already in the lane-dense (A, L) layout the output expects.
    vT_ref[0] = kvT[A:, :]

    # scores[h, l] = sum_d K[h, d, l] * reading_head[h, d] via a tiny f32 matmul with a
    # block-diagonal reading-head matrix (rows over the V half are zero).
    scores = jnp.dot(rh_ref[...], kvT, preferred_element_type=jnp.float32)   # (nh, L)

    # custom softmax over the length axis (lanes) + event threshold (f32 throughout).
    maxes = jnp.max(scores, axis=-1, keepdims=True)
    x_exp = jnp.exp(scores - maxes)
    sm = x_exp / jnp.sum(x_exp, axis=-1, keepdims=True) + jnp.exp(-maxes)
    ev_ref[0] = (sm > (1.5 / L)).astype(jnp.int32)


def run_fused_kv_events(xT, w_kvT, b_kvT, rh_block, *, A):
    """xT: (bs, H, L) f32; returns (vT (bs, A, L) f32, events (bs, nh, L) int32)."""
    bs, H, L = xT.shape
    A2 = w_kvT.shape[0]
    nh = rh_block.shape[0]
    kernel = functools.partial(fused_kv_events_kernel, A=A, L=L)
    return pl.pallas_call(
        kernel,
        out_shape=(jax.ShapeDtypeStruct((bs, A, L), jnp.float32),
                   jax.ShapeDtypeStruct((bs, nh, L), jnp.int32)),
        grid=(bs,),
        in_specs=[pl.BlockSpec((1, H, L), lambda b: (b, 0, 0)),
                  pl.BlockSpec((A2, H), lambda b: (0, 0)),
                  pl.BlockSpec((A2, 1), lambda b: (0, 0)),
                  pl.BlockSpec((nh, A2), lambda b: (0, 0))],
        out_specs=(pl.BlockSpec((1, A, L), lambda b: (b, 0, 0)),
                   pl.BlockSpec((1, nh, L), lambda b: (b, 0, 0))),
        compiler_params=pltpu.CompilerParams(dimension_semantics=("parallel",)),
    )(xT.astype(jnp.bfloat16), w_kvT.astype(jnp.bfloat16), b_kvT, rh_block)


# -----------------------------------------------------------------------------
# Scan-free glue (plain JAX, all log-depth / vectorized)
# -----------------------------------------------------------------------------
def cummax_bool_indices(ev):
    """torch.cummax(bool, dim=1)[1] (ties -> latest index), without a sequential scan."""
    L = ev.shape[1]
    pos = jnp.arange(L, dtype=jnp.int32)[None, :, None]
    evi = ev.astype(jnp.int32)
    any_so_far = lax.cummax(evi, axis=1)           # cumulative OR
    last_true = lax.cummax(pos * evi, axis=1)      # latest True position (0 if none)
    return jnp.where(any_so_far > 0, last_true, pos)


def anchors_fast(events):
    """mmap columns 0 / 1 (forward / backward anchors), scan-free."""
    col0 = cummax_bool_indices(events)
    # Constant 512 kept verbatim from the PyTorch source (module assumes seq_len == 512).
    col1 = jnp.flip(
        512 - cummax_bool_indices(jnp.flip(jnp.roll(events, -1, axis=1), axis=1)), axis=1)
    col1 = col1.at[:, 0].set(0)
    return col0, col1


def register_indices_fast(events, col0, col1, n_registers):
    """Closed form of the per-position register recurrence (no sequential scan)."""
    L = events.shape[1]
    col01 = jnp.stack([col0, col1], axis=2).astype(jnp.int32)         # (bs, L, 2, nh)
    pos = jnp.arange(L, dtype=jnp.int32)[None, :, None]
    trig = pos * events.astype(jnp.int32)                             # pos 0 never triggers
    p1 = lax.cummax(trig, axis=1)                                     # (bs, L, nh)

    ps = [p1]
    for _ in range(n_registers - 1):
        prev = ps[-1]
        nxt = jnp.where(prev >= 1,
                        jnp.take_along_axis(p1, jnp.maximum(prev - 1, 0), axis=1),
                        0)
        ps.append(nxt)

    pairs = []
    for pj in ps:
        g = jnp.take_along_axis(col01, jnp.maximum(pj - 1, 0)[:, :, None, :], axis=1)
        pairs.append(jnp.where((pj >= 1)[:, :, None, :], g, 0))
    return jnp.concatenate(pairs, axis=2)                             # (bs, L, 2R, nh)


def gather_and_combine(V1, mmap_reg, bw):
    bs, L, nh, hd = V1.shape
    R2 = mmap_reg.shape[2]
    idx_flat = mmap_reg.reshape(bs, L * R2, nh)
    # TODO(synk): data-dependent per-(b,l,r,h) gather along the sequence axis stays in
    #             XLA (fuses with the combine einsum).  mode="clip" clamps the rare
    #             col1==512 index that torch.gather would raise on.
    V2 = jnp.take_along_axis(V1, idx_flat[..., None], axis=1, mode="clip")
    V2 = V2.reshape(bs, L, R2, nh, hd)
    out = jnp.einsum('blrhd,hr->blhd', V2, bw)                        # weighted register sum
    return out.reshape(bs, L, nh * hd)


def forward_matchKV(hidden_states, params, *, n_heads, head_dim, n_registers):
    bs, L, H = hidden_states.shape
    A = n_heads * head_dim
    xT = jnp.swapaxes(hidden_states, 1, 2)                            # (bs, H, L)

    vT, ev_i32 = run_fused_kv_events(xT, params["w_kvT"], params["b_kvT"],
                                     params["rh_block"], A=A)         # Pallas (fused)
    V1 = jnp.swapaxes(vT, 1, 2).reshape(bs, L, n_heads, head_dim)
    events = jnp.swapaxes(ev_i32, 1, 2) > 0                           # (bs, L, nh)

    # TODO(synk): cummax / register recurrence / gather stay as vectorized XLA ops; a
    #             second per-batch Pallas gather pass (indices via scalar prefetch) is a
    #             possible follow-up if profiling shows the gather is the tail.
    col0, col1 = anchors_fast(events)
    mmap_reg = register_indices_fast(events, col0, col1, n_registers)
    return gather_and_combine(V1, mmap_reg, params["bw"])


# -----------------------------------------------------------------------------
# Literal (scan-based) transcription of the PyTorch loops — verification only
# -----------------------------------------------------------------------------
def _cummax_indices_scan(x_bool):
    xv = jnp.moveaxis(x_bool.astype(jnp.int32), 1, 0)
    L = xv.shape[0]

    def step(carry, inp):
        cmax, cidx = carry
        val, i = inp
        upd = val >= cmax                       # ties -> latest (torch greater_equal)
        nmax = jnp.where(upd, val, cmax)
        nidx = jnp.where(upd, i, cidx)
        return (nmax, nidx), nidx

    init = (jnp.full(xv.shape[1:], -1, jnp.int32), jnp.zeros(xv.shape[1:], jnp.int32))
    _, out = lax.scan(step, init, (xv, jnp.arange(L, dtype=jnp.int32)))
    return jnp.moveaxis(out, 0, 1)


def _register_indices_scan(events, col0, col1, n_registers):
    bs, L, nh = events.shape
    R2 = 2 * n_registers
    col01 = jnp.stack([col0, col1], axis=2).astype(jnp.int32)         # (bs, L, 2, nh)
    regs0 = jnp.zeros((bs, R2, nh), jnp.int32)
    ev_t = jnp.moveaxis(events, 1, 0)
    col01_t = jnp.moveaxis(col01, 1, 0)

    def step(regs_prev, xs):
        ev_l, col01_prev = xs
        shifted = jnp.concatenate([col01_prev, regs_prev[:, :R2 - 2]], axis=1)
        regs = jnp.where(ev_l[:, None, :], shifted, regs_prev)
        return regs, regs

    _, regs_seq = lax.scan(step, regs0, (ev_t[1:], col01_t[:-1]))
    mmap_reg = jnp.concatenate([regs0[None], regs_seq], axis=0)
    return jnp.moveaxis(mmap_reg, 0, 1)                               # (bs, L, R2, nh)


# -----------------------------------------------------------------------------
# Main
# -----------------------------------------------------------------------------
if __name__ == "__main__":
    bs, L = 2, 512            # module hard-codes seq_len == 512 (anchors / flip trick)
    hidden_size = 32
    n_heads, head_dim = 2, 16
    n_registers = 2
    A = n_heads * head_dim

    key = jax.random.PRNGKey(0)
    k_x, k_wk, k_bk, k_wv, k_bv, k_rh = jax.random.split(key, 6)

    hidden_states = jax.random.normal(k_x, (bs, L, hidden_size), jnp.float32)

    wk = jax.random.normal(k_wk, (hidden_size, A), jnp.float32) / np.sqrt(hidden_size)
    bk = 0.1 * jax.random.normal(k_bk, (A,), jnp.float32)
    wv = jax.random.normal(k_wv, (hidden_size, A), jnp.float32) / np.sqrt(hidden_size)
    bv = 0.1 * jax.random.normal(k_bv, (A,), jnp.float32)
    rh_std = np.sqrt(2.0 / (n_heads + head_dim))
    reading_head = rh_std * jax.random.normal(k_rh, (n_heads, head_dim), jnp.float32)
    bw = jnp.ones((n_heads, 2 * n_registers), jnp.float32) / (2 * n_registers)

    # Fused, transposed weights for the kernel.
    w_kv = jnp.concatenate([wk, wv], axis=1)                          # (H, 2A)
    b_kv = jnp.concatenate([bk, bv], axis=0)                          # (2A,)
    rh_block = jnp.zeros((n_heads, 2 * A), jnp.float32)               # block-diag ReadingHead
    for h in range(n_heads):
        rh_block = rh_block.at[h, h * head_dim:(h + 1) * head_dim].set(reading_head[h])

    params = dict(
        w_kvT=w_kv.T,                                                 # (2A, H)
        b_kvT=b_kv.reshape(2 * A, 1),                                 # (2A, 1)
        rh_block=rh_block,                                            # (nh, 2A)
        bw=bw,
    )

    fwd = jax.jit(functools.partial(
        forward_matchKV, n_heads=n_heads, head_dim=head_dim, n_registers=n_registers))
    context = fwd(hidden_states, params)
    jax.block_until_ready(context)
    assert context.shape == (bs, L, A)

    # --- check 1: fused kernel (V, events) vs bf16-matched jnp reference ------------
    x2d = hidden_states.reshape(bs * L, hidden_size)
    kv_ref = jnp.maximum(
        jnp.dot(x2d.astype(jnp.bfloat16), w_kv.astype(jnp.bfloat16),
                preferred_element_type=jnp.float32) + b_kv[None, :], 0.0)
    K1_ref = kv_ref[:, :A].reshape(bs, L, n_heads, head_dim)
    V1_ref = kv_ref[:, A:].reshape(bs, L, n_heads, head_dim)

    xT = jnp.swapaxes(hidden_states, 1, 2)
    vT_k, ev_k = run_fused_kv_events(xT, params["w_kvT"], params["b_kvT"],
                                     params["rh_block"], A=A)
    V1_k = jnp.swapaxes(vT_k, 1, 2).reshape(bs, L, n_heads, head_dim)
    events_k = jnp.swapaxes(ev_k, 1, 2) > 0

    assert np.allclose(np.asarray(V1_k), np.asarray(V1_ref), rtol=2e-3, atol=2e-3), \
        "Pallas fused V projection mismatch vs jnp reference"

    scores_ref = jnp.einsum('blhn,hn->blh', K1_ref, reading_head)
    maxes = jnp.max(scores_ref, axis=1, keepdims=True)
    x_exp = jnp.exp(scores_ref - maxes)
    sm_ref = x_exp / jnp.sum(x_exp, axis=1, keepdims=True) + jnp.exp(-maxes)
    ev_ref = sm_ref > (1.5 / L)
    mism = np.asarray(events_k != ev_ref)
    near_thresh = np.abs(np.asarray(sm_ref) - 1.5 / L) < 1e-4
    assert not np.any(mism & ~near_thresh), \
        "Pallas fused event mask mismatch vs jnp reference (beyond threshold tolerance)"

    # --- check 2: scan-free index computation vs literal transcription of torch loops -
    col0_f, col1_f = anchors_fast(events_k)
    idx_fast = register_indices_fast(events_k, col0_f, col1_f, n_registers)
    ctx_fast = gather_and_combine(V1_k, idx_fast, bw)

    @jax.jit
    def ref_indices(ev):
        c0 = _cummax_indices_scan(ev)
        c1 = jnp.flip(
            512 - _cummax_indices_scan(jnp.flip(jnp.roll(ev, -1, axis=1), axis=1)), axis=1)
        c1 = c1.at[:, 0].set(0)
        return _register_indices_scan(ev, c0, c1, n_registers)

    idx_ref = ref_indices(events_k)
    ctx_ref = gather_and_combine(V1_k, idx_ref, bw)

    assert np.array_equal(np.asarray(idx_fast), np.asarray(idx_ref)), \
        "scan-free register indices mismatch vs literal scan reference"
    assert np.allclose(np.asarray(ctx_fast), np.asarray(ctx_ref), rtol=1e-5, atol=1e-5), \
        "context mismatch vs literal scan reference"

    print("KERNEL_OK")
</pallas_src>

<mosaic_0001>
module attributes {stable_mosaic.version = 11 : i64} {
  func.func @fused_kv_events_kernel(%arg0: i32, %arg1: memref<1x32x512xbf16, #tpu.memory_space<vmem>>, %arg2: memref<64x32xbf16, #tpu.memory_space<vmem>>, %arg3: memref<64x1xf32, #tpu.memory_space<vmem>>, %arg4: memref<2x64xf32, #tpu.memory_space<vmem>>, %arg5: memref<1x32x512xf32, #tpu.memory_space<vmem>>, %arg6: memref<1x2x512xi32, #tpu.memory_space<vmem>>) attributes {dimension_semantics = [#tpu.dimension_semantics<parallel>], iteration_bounds = array<i64: 2>, scalar_prefetch = 0 : i64, scratch_operands = 0 : i64, tpu.core_type = #tpu.core_type<tc>, window_params = [{transform_indices = @transform_0, window_bounds = array<i64: 1, 32, 512>}, {pipeline_mode = #tpu.pipeline_mode<synchronous>, transform_indices = @transform_1, window_bounds = array<i64: 64, 32>}, {pipeline_mode = #tpu.pipeline_mode<synchronous>, transform_indices = @transform_2, window_bounds = array<i64: 64, 1>}, {pipeline_mode = #tpu.pipeline_mode<synchronous>, transform_indices = @transform_3, window_bounds = array<i64: 2, 64>}, {transform_indices = @transform_4, window_bounds = array<i64: 1, 32, 512>}, {transform_indices = @transform_5, window_bounds = array<i64: 1, 2, 512>}]} {
    %c0 = arith.constant 0 : index
    %c0_0 = arith.constant 0 : index
    %c0_1 = arith.constant 0 : index
    %0 = vector.load %arg1[%c0, %c0_0, %c0_1] : memref<1x32x512xbf16, #tpu.memory_space<vmem>>, vector<1x32x512xbf16>
    %1 = vector.shape_cast %0 : vector<1x32x512xbf16> to vector<32x512xbf16>
    %c0_2 = arith.constant 0 : index
    %c0_3 = arith.constant 0 : index
    %2 = vector.load %arg2[%c0_2, %c0_3] : memref<64x32xbf16, #tpu.memory_space<vmem>>, vector<64x32xbf16>
    %cst = arith.constant dense<0.000000e+00> : vector<64x512xf32>
    %3 = tpu.matmul %2, %1, %cst {dimension_numbers = #tpu.dot_dimension_numbers<[1], [0], [0], [1], [0, 0, 1, 1], [], []>} : vector<64x32xbf16>, vector<32x512xbf16>, vector<64x512xf32> -> vector<64x512xf32>
    %c0_4 = arith.constant 0 : index
    %c0_5 = arith.constant 0 : index
    %4 = vector.load %arg3[%c0_4, %c0_5] : memref<64x1xf32, #tpu.memory_space<vmem>>, vector<64x1xf32>
    %5 = vector.broadcast %4 : vector<64x1xf32> to vector<64x512xf32>
    %6 = arith.addf %3, %5 : vector<64x512xf32>
    %cst_6 = arith.constant 0.000000e+00 : f32
    %7 = vector.broadcast %cst_6 : f32 to vector<64x512xf32>
    %8 = arith.maximumf %6, %7 : vector<64x512xf32>
    %9 = vector.extract_strided_slice %8 {offsets = [32, 0], sizes = [32, 512], strides = [1, 1]} : vector<64x512xf32> to vector<32x512xf32>
    %c0_7 = arith.constant 0 : index
    %c0_8 = arith.constant 0 : index
    %c0_9 = arith.constant 0 : index
    %10 = vector.load %arg5[%c0_7, %c0_8, %c0_9] : memref<1x32x512xf32, #tpu.memory_space<vmem>>, vector<1x32x512xf32>
    %11 = vector.shape_cast %10 : vector<1x32x512xf32> to vector<32x512xf32>
    %12 = vector.shape_cast %9 : vector<32x512xf32> to vector<1x32x512xf32>
    tpu.vector_store %arg5[%c0_7, %c0_8, %c0_9], %12 {strides = array<i32>} : memref<1x32x512xf32, #tpu.memory_space<vmem>>, vector<1x32x512xf32>,
    %c0_10 = arith.constant 0 : index
    %c0_11 = arith.constant 0 : index
    %13 = vector.load %arg4[%c0_10, %c0_11] : memref<2x64xf32, #tpu.memory_space<vmem>>, vector<2x64xf32>
    %cst_12 = arith.constant dense<0.000000e+00> : vector<2x512xf32>
    %14 = tpu.matmul %13, %8, %cst_12 {dimension_numbers = #tpu.dot_dimension_numbers<[1], [0], [0], [1], [0, 0, 1, 1], [], []>} : vector<2x64xf32>, vector<64x512xf32>, vector<2x512xf32> -> vector<2x512xf32>
    %cst_13 = arith.constant dense<0xFF800000> : vector<2xf32>
    %15 = vector.multi_reduction <maximumf>, %14, %cst_13 [1] : vector<2x512xf32> to vector<2xf32>
    %16 = vector.shape_cast %15 : vector<2xf32> to vector<2x1xf32>
    %17 = vector.broadcast %16 : vector<2x1xf32> to vector<2x512xf32>
    %18 = arith.subf %14, %17 : vector<2x512xf32>
    %19 = math.exp %18 : vector<2x512xf32>
    %cst_14 = arith.constant dense<0.000000e+00> : vector<2xf32>
    %20 = vector.multi_reduction <add>, %19, %cst_14 [1] : vector<2x512xf32> to vector<2xf32>
    %21 = vector.shape_cast %20 : vector<2xf32> to vector<2x1xf32>
    %22 = vector.broadcast %21 : vector<2x1xf32> to vector<2x512xf32>
    %23 = arith.divf %19, %22 : vector<2x512xf32>
    %cst_15 = arith.constant 0.000000e+00 : f32
    %24 = vector.broadcast %cst_15 : f32 to vector<2x1xf32>
    %25 = arith.subf %24, %16 : vector<2x1xf32>
    %26 = math.exp %25 : vector<2x1xf32>
    %27 = vector.broadcast %26 : vector<2x1xf32> to vector<2x512xf32>
    %28 = arith.addf %23, %27 : vector<2x512xf32>
    %cst_16 = arith.constant 0.0029296875 : f32
    %29 = vector.broadcast %cst_16 : f32 to vector<2x512xf32>
    %30 = arith.cmpf ogt, %28, %29 : vector<2x512xf32>
    %31 = arith.extui %30 : vector<2x512xi1> to vector<2x512xi32>
    %c0_17 = arith.constant 0 : index
    %c0_18 = arith.constant 0 : index
    %c0_19 = arith.constant 0 : index
    %32 = vector.load %arg6[%c0_17, %c0_18, %c0_19] : memref<1x2x512xi32, #tpu.memory_space<vmem>>, vector<1x2x512xi32>
    %33 = vector.shape_cast %32 : vector<1x2x512xi32> to vector<2x512xi32>
    %34 = vector.shape_cast %31 : vector<2x512xi32> to vector<1x2x512xi32>
    tpu.vector_store %arg6[%c0_17, %c0_18, %c0_19], %34 {strides = array<i32>} : memref<1x2x512xi32, #tpu.memory_space<vmem>>, vector<1x2x512xi32>,
    return
  }
  func.func @transform_0(%arg0: i32) -> (i32, i32, i32) {
    %c0_i32 = arith.constant 0 : i32
    %c0_i32_0 = arith.constant 0 : i32
    %c0_i32_1 = arith.constant 0 : i32
    return %arg0, %c0_i32, %c0_i32_0 : i32, i32, i32
  }
  func.func @transform_1(%arg0: i32) -> (i32, i32) {
    %c0_i32 = arith.constant 0 : i32
    %c0_i32_0 = arith.constant 0 : i32
    %c0_i32_1 = arith.constant 0 : i32
    return %c0_i32, %c0_i32_0 : i32, i32
  }
  func.func @transform_2(%arg0: i32) -> (i32, i32) {
    %c0_i32 = arith.constant 0 : i32
    %c0_i32_0 = arith.constant 0 : i32
    %c0_i32_1 = arith.constant 0 : i32
    return %c0_i32, %c0_i32_0 : i32, i32
  }
  func.func @transform_3(%arg0: i32) -> (i32, i32) {
    %c0_i32 = arith.constant 0 : i32
    %c0_i32_0 = arith.constant 0 : i32
    %c0_i32_1 = arith.constant 0 : i32
    return %c0_i32, %c0_i32_0 : i32, i32
  }
  func.func @transform_4(%arg0: i32) -> (i32, i32, i32) {
    %c0_i32 = arith.constant 0 : i32
    %c0_i32_0 = arith.constant 0 : i32
    %c0_i32_1 = arith.constant 0 : i32
    return %arg0, %c0_i32, %c0_i32_0 : i32, i32, i32
  }
  func.func @transform_5(%arg0: i32) -> (i32, i32, i32) {
    %c0_i32 = arith.constant 0 : i32
    %c0_i32_0 = arith.constant 0 : i32
    %c0_i32_1 = arith.constant 0 : i32
    return %arg0, %c0_i32, %c0_i32_0 : i32, i32, i32
  }
}

</mosaic_0001>

<llo_original>
// kernel: reverse
$region0: #{reverse}
  %s0 = inlined_call_operand.vmem [shape: s32[2,512,2], index: 0, kind: input, shape index: {}]
  %s1 = inlined_call_operand.vmem [shape: s32[2,512,2], index: 1, kind: output, shape index: {}]
  %v2 = vlaneseq
  %v3 = vsub.s32 127, %v2
  %4 = vset.pattern.permute.xlu0 %v3
  $region1: #{reverse} parent=0
    #allocation0 [shape = 'u8[8192]{0}', space=vmem, size = 0x2000, scoped, tag = 'operand span for operand 0']
    #allocation1 [shape = 'u8[4096]{0}', space=vmem, size = 0x1000, scoped, tag = 'packed  for operand 0']
    #allocation2 [shape = 'u8[8192]{0}', space=vmem, size = 0x2000, scoped, tag = 'operand span for operand 1']
    #allocation3 [shape = 'u8[4096]{0}', space=vmem, size = 0x1000, scoped, tag = 'packed  for operand 1']
    loop: start=0, step=1, limit=6
    $region2: #{reverse} parent=1 // loop_pre_header
      _
    $region3: #{reverse} parent=1 // loop_header
      %s6 = sphi 0, %s10
      %p7 = scmp.ge.s32.totalorder %s6, 6
      %s13 = sphi 0, %s32
      %s14 = sphi 0, %s28
      %s15 = sphi 0, %s24
      %s16 = sphi 0, %s13
      %s17 = sphi 0, %s14
      %s18 = sphi 0, %s15
      %s19 = sphi 0, %s16
      %s20 = sphi 0, %s17
      %s21 = sphi 0, %s18
    $region4: #{reverse} parent=1 // loop_header_branch
      %9 = sbr.rel (%p7) target = $region8
    $region5: #{reverse} parent=1 // loop_body
      %s11 = ssub.s32 %s6, 1
      %s12 = ssub.s32 %s6, 2
      %s22 = sadd.s32 1, %s15
      %p23 = scmp.ge.s32.totalorder %s22, 4
      %s24 = scalar_select %p23, 0, %s22
      %s25 = sadd.s32 1, %s14
      %s26 = scalar_select %p23, %s25, %s14
      %p27 = scmp.ge.s32.totalorder %s26, 1
      %s28 = scalar_select %p27, 0, %s26
      %s29 = sadd.s32 1, %s13
      %s30 = scalar_select %p27, %s29, %s13
      %p31 = scmp.ge.s32.totalorder %s30, 1
      %s32 = scalar_select %p31, 0, %s30
      %p33 = scmp.le.s32.totalorder 1, %s6
      %p34 = scmp.lt.s32.totalorder %s6, 5
      %p35 = pnand %p33, %p34
      %p36 = pneg %p35
      // Predicated region
      $region9: #{reverse} parent=5 // pred_check
        _
      $region10: #{reverse} parent=5 // pred_check_branch
        %38 = sbr.rel (%p35) target = $region12
      $region11: #{reverse} parent=5 // pred_region
        %s39 = ssub.s32 %s6, 1
      $region12: #{reverse} parent=5 // pred_fallthru
        _
      %p40 = scmp.lt.s32.totalorder %s6, 4
      // Predicated region
      $region13: #{reverse} parent=5 // pred_check
        %p41 = pneg %p40
      $region14: #{reverse} parent=5 // pred_check_branch
        %43 = sbr.rel (%p41) target = $region16
      $region15: #{reverse} parent=5 // pred_region
        %s44 = sand.u32 %s6, 1
        %s45 = sand.u32 %s6, 1
        %s46 = smul.addr %s45, 4
        %s47 = scalar_lea.vmem [#allocation1], %s46
        %s48 = ssub.s32 3, %s15
        %s49 = smul.u32 2, %s13
        %s50 = smul.addr %s14, 4
        %s51 = sadd.s32 %s48, %s50
        %s52 = smul.addr %s49, 4
        %s53 = sadd.s32 %s51, %s52
        %s54 = smul.addr %s53, 2
        %s55 = scalar_lea.vmem %s0, %s54
        // Predicated region
        $region17: #{reverse} parent=15 // pred_check
          _
        $region18: #{reverse} parent=15 // pred_check_branch
          %57 = sbr.rel (0) target = $region20
        $region19: #{reverse} parent=15 // pred_region
          // Predicated region
          $region21: #{reverse} parent=19 // pred_check
            _
          $region22: #{reverse} parent=19 // pred_check_branch
            %59 = sbr.rel target = $region24
          $region23: #{reverse} parent=19 // pred_region
            // Predicated region
            $region36: #{reverse} parent=23 // pred_check
              _
            $region37: #{reverse} parent=23 // pred_check_branch
              %77 = sbr.rel (0) target = $region39
            $region38: #{reverse} parent=23 // pred_region
              %s79 = ssub.s32 4, 1
              loop: start=0, step=1, limit=1
              $region40: #{reverse} parent=38 // loop_pre_header
                _
              $region41: #{reverse} parent=38 // loop_header
                %s81 = sphi 0, %s85
                %p82 = scmp.ge.s32.totalorder %s81, 1
                %s86 = sphi %s55, %s55
                %s87 = sphi %s47, %s47
              $region42: #{reverse} parent=38 // loop_header_branch
                %84 = sbr.rel (%p82) target = $region46
              $region43: #{reverse} parent=38 // loop_body
                %v88 = vld [vmem:[%s86] sm:%s79]
                %89 = vst [vmem:[%s87] sm:%s79] %v88
                %v90 = vld [vmem:[%s86 + $0x8] sm:%s79]
                %91 = vst [vmem:[%s87 + $0x2] sm:%s79] %v90
              $region44: #{reverse} parent=38 // loop_footer
                %s85 = sadd.s32 1, %s81
              $region45: #{reverse} parent=38 // loop_footer_branch
                %80 = sbr.rel target = $region41
              $region46: #{reverse} parent=38 // loop_exit
                _
            $region39: #{reverse} parent=23 // pred_fallthru
              _
          $region24: #{reverse} parent=19 // pred_fallthru
            _
          // Predicated region
          $region25: #{reverse} parent=19 // pred_check
            _
          $region26: #{reverse} parent=19 // pred_check_branch
            %61 = sbr.rel (0) target = $region28
          $region27: #{reverse} parent=19 // pred_region
            %s63 = ssub.s32 4, 1
            loop: start=0, step=1, limit=1
            $region29: #{reverse} parent=27 // loop_pre_header
              _
            $region30: #{reverse} parent=27 // loop_header
              %s65 = sphi 0, %s69
              %p66 = scmp.ge.s32.totalorder %s65, 1
              %s70 = sphi %s55, %s55
              %s71 = sphi %s47, %s47
            $region31: #{reverse} parent=27 // loop_header_branch
              %68 = sbr.rel (%p66) target = $region35
            $region32: #{reverse} parent=27 // loop_body
              %v72 = vld [vmem:[%s70] sm:%s63]
              %73 = vst [vmem:[%s71] sm:%s63] %v72
              %v74 = vld [vmem:[%s70 + $0x8] sm:%s63]
              %75 = vst [vmem:[%s71 + $0x2] sm:%s63] %v74
            $region33: #{reverse} parent=27 // loop_footer
              %s69 = sadd.s32 1, %s65
            $region34: #{reverse} parent=27 // loop_footer_branch
              %64 = sbr.rel target = $region30
            $region35: #{reverse} parent=27 // loop_exit
              _
          $region28: #{reverse} parent=19 // pred_fallthru
            _
        $region20: #{reverse} parent=15 // pred_fallthru
          _
        %92 = vnop
      $region16: #{reverse} parent=5 // pred_fallthru
        _
      %p93 = scmp.le.s32.totalorder 1, %s6
      %p94 = scmp.lt.s32.totalorder %s6, 5
      %p95 = pnand %p93, %p94
      %p96 = pneg %p95
      // Predicated region
      $region47: #{reverse} parent=5 // pred_check
        _
      $region48: #{reverse} parent=5 // pred_check_branch
        %98 = sbr.rel (%p95) target = $region50
      $region49: #{reverse} parent=5 // pred_region
        %s99 = ssub.s32 %s6, 1
        %s100 = sand.u32 %s11, 1
        %s101 = sand.u32 %s11, 1
        %s102 = smul.addr %s101, 4
        %s103 = scalar_lea.vmem [#allocation1], %s102
        %s104 = sand.u32 %s11, 1
        %s105 = sand.u32 %s11, 1
        %s106 = smul.addr %s105, 4
        %s107 = scalar_lea.vmem [#allocation1], %s106
        %s108 = sand.u32 %s11, 1
        %s109 = sand.u32 %s11, 1
        %s110 = smul.addr %s109, 4
        %s111 = scalar_lea.vmem [#allocation3], %s110
        %s113 = ssub.s32 4, 1
        %s114 = scalar_lea.vmem %s107, 2 [#allocation1]
        %v115 = vld [vmem:[%s114] sm:%s113]
        %s116 = scalar_lea.vmem [#allocation0], 8
        %117 = vst [vmem:[%s116] sm:%s113] %v115
        %v118 = vld [vmem:[%s107] sm:%s113]
        %119 = vst [vmem:[#allocation0] sm:%s113] %v118
        %s120 = ssub.s32 3, %s18
        %s121 = smul.u32 2, %s16
        %s122 = smul.u32 2, %s16
        %v123 = vld [vmem:[#allocation0] sm:$0xff]
        %124 = vperm.xlu0 %4, %v123
        %v125 = vpop.permute.xlu0 %124
        %126 = vst [vmem:[#allocation2] sm:$0xff] %v125
        %s127 = scalar_lea.vmem [#allocation2], 8
        %s128 = scalar_lea.vmem [#allocation0], 8
        %v129 = vld [vmem:[%s128] sm:$0xff]
        %130 = vperm.xlu0 %4, %v129
        %v131 = vpop.permute.xlu0 %130
        %132 = vst [vmem:[%s127] sm:$0xff] %v131
        %s134 = ssub.s32 4, 1
        %v135 = vld [vmem:[#allocation2] sm:%s134]
        %s137 = ssub.s32 4, 1
        %138 = vst [vmem:[%s111] sm:%s137] %v135
        %s139 = scalar_lea.vmem [#allocation2], 8
        %v140 = vld [vmem:[%s139] sm:%s134]
        %s142 = ssub.s32 4, 1
        %s143 = scalar_lea.vmem %s111, 2 [#allocation3]
        %144 = vst [vmem:[%s143] sm:%s142] %v140
        %s145 = sand.u32 %s11, 1
        %s146 = sand.u32 %s11, 1
        %s147 = smul.addr %s146, 4
        %s148 = scalar_lea.vmem [#allocation3], %s147
        %s149 = smul.u32 2, %s16
        %s150 = smul.addr %s17, 4
        %s151 = sadd.s32 %s18, %s150
        %s152 = smul.addr %s149, 4
        %s153 = sadd.s32 %s151, %s152
        %s154 = smul.addr %s153, 2
        %s155 = scalar_lea.vmem %s1, %s154
        // Predicated region
        $region51: #{reverse} parent=49 // pred_check
          _
        $region52: #{reverse} parent=49 // pred_check_branch
          %157 = sbr.rel (0) target = $region54
        $region53: #{reverse} parent=49 // pred_region
          // Predicated region
          $region55: #{reverse} parent=53 // pred_check
            _
          $region56: #{reverse} parent=53 // pred_check_branch
            %159 = sbr.rel target = $region58
          $region57: #{reverse} parent=53 // pred_region
            // Predicated region
            $region70: #{reverse} parent=57 // pred_check
              _
            $region71: #{reverse} parent=57 // pred_check_branch
              %177 = sbr.rel (0) target = $region73
            $region72: #{reverse} parent=57 // pred_region
              %s179 = ssub.s32 4, 1
              loop: start=0, step=1, limit=1
              $region74: #{reverse} parent=72 // loop_pre_header
                _
              $region75: #{reverse} parent=72 // loop_header
                %s181 = sphi 0, %s185
                %p182 = scmp.ge.s32.totalorder %s181, 1
                %s186 = sphi %s148, %s148
                %s187 = sphi %s155, %s155
              $region76: #{reverse} parent=72 // loop_header_branch
                %184 = sbr.rel (%p182) target = $region80
              $region77: #{reverse} parent=72 // loop_body
                %v188 = vld [vmem:[%s186] sm:%s179]
                %189 = vst [vmem:[%s187] sm:%s179] %v188
                %v190 = vld [vmem:[%s186 + $0x2] sm:%s179]
                %191 = vst [vmem:[%s187 + $0x8] sm:%s179] %v190
              $region78: #{reverse} parent=72 // loop_footer
                %s185 = sadd.s32 1, %s181
              $region79: #{reverse} parent=72 // loop_footer_branch
                %180 = sbr.rel target = $region75
              $region80: #{reverse} parent=72 // loop_exit
                _
            $region73: #{reverse} parent=57 // pred_fallthru
              _
          $region58: #{reverse} parent=53 // pred_fallthru
            _
          // Predicated region
          $region59: #{reverse} parent=53 // pred_check
            _
          $region60: #{reverse} parent=53 // pred_check_branch
            %161 = sbr.rel (0) target = $region62
          $region61: #{reverse} parent=53 // pred_region
            %s163 = ssub.s32 4, 1
            loop: start=0, step=1, limit=1
            $region63: #{reverse} parent=61 // loop_pre_header
              _
            $region64: #{reverse} parent=61 // loop_header
              %s165 = sphi 0, %s169
              %p166 = scmp.ge.s32.totalorder %s165, 1
              %s170 = sphi %s148, %s148
              %s171 = sphi %s155, %s155
            $region65: #{reverse} parent=61 // loop_header_branch
              %168 = sbr.rel (%p166) target = $region69
            $region66: #{reverse} parent=61 // loop_body
              %v172 = vld [vmem:[%s170] sm:%s163]
              %173 = vst [vmem:[%s171] sm:%s163] %v172
              %v174 = vld [vmem:[%s170 + $0x2] sm:%s163]
              %175 = vst [vmem:[%s171 + $0x8] sm:%s163] %v174
            $region67: #{reverse} parent=61 // loop_footer
              %s169 = sadd.s32 1, %s165
            $region68: #{reverse} parent=61 // loop_footer_branch
              %164 = sbr.rel target = $region64
            $region69: #{reverse} parent=61 // loop_exit
              _
          $region62: #{reverse} parent=53 // pred_fallthru
            _
        $region54: #{reverse} parent=49 // pred_fallthru
          _
        %192 = vnop
      $region50: #{reverse} parent=5 // pred_fallthru
        _
      %p193 = scmp.le.s32.totalorder 2, %s6
      // Predicated region
      $region81: #{reverse} parent=5 // pred_check
        %p194 = pneg %p193
      $region82: #{reverse} parent=5 // pred_check_branch
        %196 = sbr.rel (%p194) target = $region84
      $region83: #{reverse} parent=5 // pred_region
        %s197 = ssub.s32 %s6, 2
        %s198 = sand.u32 %s12, 1
        %s199 = sand.u32 %s12, 1
        %s200 = smul.addr %s199, 4
        %s201 = scalar_lea.vmem [#allocation3], %s200
      $region84: #{reverse} parent=5 // pred_fallthru
        _
    $region6: #{reverse} parent=1 // loop_footer
      %s10 = sadd.s32 1, %s6
    $region7: #{reverse} parent=1 // loop_footer_branch
      %5 = sbr.rel target = $region3
    $region8: #{reverse} parent=1 // loop_exit
      _

// kernel: forward_matchKV.1
$region0: #{forward_matchKV.1}
  #allocation0 [shape = 'u32[]', space=smem, size = 0x4, offset = 0x4, fixed_abs, tag = 'smem constant byte address 0x4 - core index']
  #allocation1 [shape = 'u32[72,128]{1,0:T(1,128)}', space=vmem, size = 0x9000, scoped, tag = 'internal scratch']
  %s0 = inlined_call_operand.vmem [shape: bf16[2,32,512], index: 0, kind: input, shape index: {}]
  %s1 = inlined_call_operand.vmem [shape: bf16[64,32], index: 1, kind: input, shape index: {}]
  %s2 = inlined_call_operand.vmem [shape: f32[64,1], index: 2, kind: input, shape index: {}]
  %s3 = inlined_call_operand.hbm [shape: f32[2,64], index: 3, kind: input, shape index: {}]
  %s4 = inlined_call_operand.vmem [shape: f32[2,32,512], index: 4, kind: output, shape index: {0}]
  %s5 = inlined_call_operand.vmem [shape: s32[2,2,512], index: 5, kind: output, shape index: {1}]
  %6 = xla_tuple %s4, %s5
  %s7 = sld [smem:[#allocation0]]
  $region61: #{forward_matchKV.1} parent=0
    _
  %s9 = ssub.s32 1, %s7
  %s10 = scalar_select 0, %s9, %s7
  $region1: #{forward_matchKV.1} parent=0
    #allocation2 [shape = 'u8[1024]{0}', space=vmem, size = 0x400, scoped, tag = 'input window, operand 3, single buffered']
    #allocation3 [shape = 's32[2]{0}', space=sflag, size = 0x8, scoped, tag = 'scoped memory for forward_matchKV.1']
    %11 = vsyncpa [#allocation3], 0
    loop: start=0, step=1, limit=4
    $region2: #{forward_matchKV.1} parent=1 // loop_pre_header
      _
    $region3: #{forward_matchKV.1} parent=1 // loop_header
      %s13 = sphi 0, %s17
      %p14 = scmp.ge.s32.totalorder %s13, 4
      %s23 = sphi 0, %s25
      %s26 = sphi 0, %s23
      %s27 = sphi 0, %s26
      %s43 = sphi 0, %s27
      %s47 = sphi 0, %s47
      %s49 = sphi 0, %s47
      %s50 = sphi 0, %s49
      %s64 = sphi 0, %s50
      %s68 = sphi 0, %s68
      %s70 = sphi 0, %s68
      %s71 = sphi 0, %s70
      %s85 = sphi 0, %s71
      %s89 = sphi 0, %s89
      %s91 = sphi 0, %s89
      %s92 = sphi 0, %s91
      %s106 = sphi 0, %s92
      %s112 = sphi 0, %s114
      %s115 = sphi 0, %s112
      %s116 = sphi 0, %s115
      %s132 = sphi 0, %s116
      %s138 = sphi 0, %s140
      %s141 = sphi 0, %s138
      %s142 = sphi 0, %s141
      %s158 = sphi 0, %s142
    $region4: #{forward_matchKV.1} parent=1 // loop_header_branch
      %16 = sbr.rel (%p14) target = $region8
    $region5: #{forward_matchKV.1} parent=1 // loop_body
      %s18 = ssub.s32 %s13, 1
      %s19 = ssub.s32 %s13, 2
      %s20 = sadd.s32 %s13, 1
      %s21 = ssub.s32 %s13, %s20
      %p22 = scmp.eq.s32.totalorder %s21, 0
      %s24 = sadd.s32 %s23, 1
      %s25 = scalar_select %p22, %s23, %s24
      %p28 = pneg %p22
      %p29 = scmp.eq.s32.totalorder %s13, 1
      %p30 = por %p28, %p29
      %p31 = scmp.ne.s32.totalorder %s23, %s26
      %p32 = scmp.eq.s32.totalorder %s13, 0
      %p33 = por %p31, %p32
      %p34 = scmp.ne.s32.totalorder %s23, %s26
      %p35 = scmp.eq.s32.totalorder %s18, 1
      %p36 = por %p34, %p35
      %p37 = scmp.ne.s32.totalorder %s26, %s27
      %p38 = scmp.eq.s32.totalorder %s18, 0
      %p39 = por %p37, %p38
      %p40 = scmp.ne.s32.totalorder %s26, %s27
      %p41 = scmp.eq.s32.totalorder %s19, 1
      %p42 = por %p40, %p41
      %p44 = scmp.ne.s32.totalorder %s27, %s43
      %p45 = scmp.eq.s32.totalorder %s19, 0
      %p46 = por %p44, %p45
      %s48 = sadd.s32 %s47, 1
      %p51 = scmp.eq.s32.totalorder %s13, 1
      %p52 = scmp.ne.s32.totalorder %s47, %s49
      %p53 = scmp.eq.s32.totalorder %s13, 0
      %p54 = por %p52, %p53
      %p55 = scmp.ne.s32.totalorder %s47, %s49
      %p56 = scmp.eq.s32.totalorder %s18, 1
      %p57 = por %p55, %p56
      %p58 = scmp.ne.s32.totalorder %s49, %s50
      %p59 = scmp.eq.s32.totalorder %s18, 0
      %p60 = por %p58, %p59
      %p61 = scmp.ne.s32.totalorder %s49, %s50
      %p62 = scmp.eq.s32.totalorder %s19, 1
      %p63 = por %p61, %p62
      %p65 = scmp.ne.s32.totalorder %s50, %s64
      %p66 = scmp.eq.s32.totalorder %s19, 0
      %p67 = por %p65, %p66
      %s69 = sadd.s32 %s68, 1
      %p72 = scmp.eq.s32.totalorder %s13, 1
      %p73 = scmp.ne.s32.totalorder %s68, %s70
      %p74 = scmp.eq.s32.totalorder %s13, 0
      %p75 = por %p73, %p74
      %p76 = scmp.ne.s32.totalorder %s68, %s70
      %p77 = scmp.eq.s32.totalorder %s18, 1
      %p78 = por %p76, %p77
      %p79 = scmp.ne.s32.totalorder %s70, %s71
      %p80 = scmp.eq.s32.totalorder %s18, 0
      %p81 = por %p79, %p80
      %p82 = scmp.ne.s32.totalorder %s70, %s71
      %p83 = scmp.eq.s32.totalorder %s19, 1
      %p84 = por %p82, %p83
      %p86 = scmp.ne.s32.totalorder %s71, %s85
      %p87 = scmp.eq.s32.totalorder %s19, 0
      %p88 = por %p86, %p87
      %s90 = sadd.s32 %s89, 1
      %p93 = scmp.eq.s32.totalorder %s13, 1
      %p94 = scmp.ne.s32.totalorder %s89, %s91
      %p95 = scmp.eq.s32.totalorder %s13, 0
      %p96 = por %p94, %p95
      %p97 = scmp.ne.s32.totalorder %s89, %s91
      %p98 = scmp.eq.s32.totalorder %s18, 1
      %p99 = por %p97, %p98
      %p100 = scmp.ne.s32.totalorder %s91, %s92
      %p101 = scmp.eq.s32.totalorder %s18, 0
      %p102 = por %p100, %p101
      %p103 = scmp.ne.s32.totalorder %s91, %s92
      %p104 = scmp.eq.s32.totalorder %s19, 1
      %p105 = por %p103, %p104
      %p107 = scmp.ne.s32.totalorder %s92, %s106
      %p108 = scmp.eq.s32.totalorder %s19, 0
      %p109 = por %p107, %p108
      %s110 = ssub.s32 %s13, %s20
      %p111 = scmp.eq.s32.totalorder %s110, 0
      %s113 = sadd.s32 %s112, 1
      %s114 = scalar_select %p111, %s112, %s113
      %p117 = pneg %p111
      %p118 = scmp.eq.s32.totalorder %s13, 1
      %p119 = por %p117, %p118
      %p120 = scmp.ne.s32.totalorder %s112, %s115
      %p121 = scmp.eq.s32.totalorder %s13, 0
      %p122 = por %p120, %p121
      %p123 = scmp.ne.s32.totalorder %s112, %s115
      %p124 = scmp.eq.s32.totalorder %s18, 1
      %p125 = por %p123, %p124
      %p126 = scmp.ne.s32.totalorder %s115, %s116
      %p127 = scmp.eq.s32.totalorder %s18, 0
      %p128 = por %p126, %p127
      %p129 = scmp.ne.s32.totalorder %s115, %s116
      %p130 = scmp.eq.s32.totalorder %s19, 1
      %p131 = por %p129, %p130
      %p133 = scmp.ne.s32.totalorder %s116, %s132
      %p134 = scmp.eq.s32.totalorder %s19, 0
      %p135 = por %p133, %p134
      %s136 = ssub.s32 %s13, %s20
      %p137 = scmp.eq.s32.totalorder %s136, 0
      %s139 = sadd.s32 %s138, 1
      %s140 = scalar_select %p137, %s138, %s139
      %p143 = pneg %p137
      %p144 = scmp.eq.s32.totalorder %s13, 1
      %p145 = por %p143, %p144
      %p146 = scmp.ne.s32.totalorder %s138, %s141
      %p147 = scmp.eq.s32.totalorder %s13, 0
      %p148 = por %p146, %p147
      %p149 = scmp.ne.s32.totalorder %s138, %s141
      %p150 = scmp.eq.s32.totalorder %s18, 1
      %p151 = por %p149, %p150
      %p152 = scmp.ne.s32.totalorder %s141, %s142
      %p153 = scmp.eq.s32.totalorder %s18, 0
      %p154 = por %p152, %p153
      %p155 = scmp.ne.s32.totalorder %s141, %s142
      %p156 = scmp.eq.s32.totalorder %s19, 1
      %p157 = por %p155, %p156
      %p159 = scmp.ne.s32.totalorder %s142, %s158
      %p160 = scmp.eq.s32.totalorder %s19, 0
      %p161 = por %p159, %p160
      %p162 = scmp.le.s32.totalorder 1, %s13
      %p163 = scmp.lt.s32.totalorder %s13, 3
      %p164 = pnand %p162, %p163
      %p165 = pneg %p164
      // Predicated region
      $region9: #{forward_matchKV.1} parent=5 // pred_check
        _
      $region10: #{forward_matchKV.1} parent=5 // pred_check_branch
        %167 = sbr.rel (%p164) target = $region12
      $region11: #{forward_matchKV.1} parent=5 // pred_region
        %s168 = ssub.s32 %s13, 1
        // Predicated region
        $region13: #{forward_matchKV.1} parent=11 // pred_check
          %p169 = pneg %p60
        $region14: #{forward_matchKV.1} parent=11 // pred_check_branch
          %171 = sbr.rel (%p169) target = $region16
        $region15: #{forward_matchKV.1} parent=11 // pred_region
          _
        $region16: #{forward_matchKV.1} parent=11 // pred_fallthru
          _
        // Predicated region
        $region17: #{forward_matchKV.1} parent=11 // pred_check
          %p172 = pneg %p81
        $region18: #{forward_matchKV.1} parent=11 // pred_check_branch
          %174 = sbr.rel (%p172) target = $region20
        $region19: #{forward_matchKV.1} parent=11 // pred_region
          _
        $region20: #{forward_matchKV.1} parent=11 // pred_fallthru
          _
        // Predicated region
        $region21: #{forward_matchKV.1} parent=11 // pred_check
          %p175 = pneg %p102
        $region22: #{forward_matchKV.1} parent=11 // pred_check_branch
          %177 = sbr.rel (%p175) target = $region24
        $region23: #{forward_matchKV.1} parent=11 // pred_region
          %179 = vsyncadd [#allocation3], 0
          %s181 = sshll.u32 %s3, 4
          %s182 = int_to_ptr.hbm [resolvable:$true] %s181
          %s183 = sshll.u32 [#allocation2], 4
          %s184 = int_to_ptr.vmem [resolvable:$true] %s183
          %186 = dma.hbm_to_vmem [thread:$0]  %s182, 32, %s184, [#allocation3]
        $region24: #{forward_matchKV.1} parent=11 // pred_fallthru
          _
      $region12: #{forward_matchKV.1} parent=5 // pred_fallthru
        _
      %p187 = scmp.lt.s32.totalorder %s13, 2
      // Predicated region
      $region25: #{forward_matchKV.1} parent=5 // pred_check
        %p188 = pneg %p187
      $region26: #{forward_matchKV.1} parent=5 // pred_check_branch
        %190 = sbr.rel (%p188) target = $region28
      $region27: #{forward_matchKV.1} parent=5 // pred_region
        // Predicated region
        $region29: #{forward_matchKV.1} parent=27 // pred_check
          %p191 = pneg %p33
        $region30: #{forward_matchKV.1} parent=27 // pred_check_branch
          %193 = sbr.rel (%p191) target = $region32
        $region31: #{forward_matchKV.1} parent=27 // pred_region
          %p194 = scmp.lt.s32.totalorder %s13, 1
          %s195 = scalar_select %p194, %s13, 1
          %s196 = smul.addr %s195, 16
          %s197 = smul.addr %s196, 4
          %s198 = scalar_lea.vmem %s0, %s197
        $region32: #{forward_matchKV.1} parent=27 // pred_fallthru
          _
      $region28: #{forward_matchKV.1} parent=5 // pred_fallthru
        _
      %p199 = scmp.le.s32.totalorder 1, %s13
      %p200 = scmp.lt.s32.totalorder %s13, 3
      %p201 = pnand %p199, %p200
      %p202 = pneg %p201
      // Predicated region
      $region33: #{forward_matchKV.1} parent=5 // pred_check
        _
      $region34: #{forward_matchKV.1} parent=5 // pred_check_branch
        %204 = sbr.rel (%p201) target = $region36
      $region35: #{forward_matchKV.1} parent=5 // pred_region
        %s205 = ssub.s32 %s13, 1
        // Predicated region
        $region37: #{forward_matchKV.1} parent=35 // pred_check
          %p206 = pneg %p102
        $region38: #{forward_matchKV.1} parent=35 // pred_check_branch
          %208 = sbr.rel (%p206) target = $region40
        $region39: #{forward_matchKV.1} parent=35 // pred_region
          %210 = dma.done [#allocation3], 32
        $region40: #{forward_matchKV.1} parent=35 // pred_fallthru
          _
        %p211 = scmp.lt.s32.totalorder %s18, 1
        %s212 = scalar_select %p211, %s18, 1
        %s213 = smul.addr %s212, 16
        %s214 = smul.addr %s213, 4
        %s215 = scalar_lea.vmem %s0, %s214
        %p216 = pneg %p39
        %p217 = pneg %p36
        %p218 = pneg %p60
        %p219 = pneg %p57
        %p220 = pneg %p81
        %p221 = pneg %p78
        %p222 = pneg %p102
        %p223 = pneg %p99
        %p224 = pneg %p128
        %p225 = pneg %p125
        %p226 = scmp.lt.s32.totalorder %s18, 1
        %s227 = scalar_select %p226, %s18, 1
        %s228 = smul.addr %s227, 16
        %s229 = smul.addr %s228, 8
        %s230 = scalar_lea.vmem %s4, %s229
        %p231 = pneg %p154
        %p232 = pneg %p151
        %p233 = scmp.lt.s32.totalorder %s18, 1
        %s234 = scalar_select %p233, %s18, 1
        %s235 = smul.addr %s234, 4
        %s236 = smul.addr %s235, 2
        %s237 = scalar_lea.vmem %s5, %s236
        %p238 = scmp.lt.s32.totalorder %s18, 1
        %s239 = scalar_select %p238, %s18, 1
        %s240 = smul.addr %s239, 16
        %s241 = smul.addr %s240, 4
        %s242 = scalar_lea.vmem %s0, %s241
        %p243 = scmp.lt.s32.totalorder %s18, 1
        %s244 = scalar_select %p243, %s18, 1
        %s245 = smul.addr %s244, 16
        %s246 = smul.addr %s245, 8
        %s247 = scalar_lea.vmem %s4, %s246
        %p248 = scmp.lt.s32.totalorder %s18, 1
        %s249 = scalar_select %p248, %s18, 1
        %s250 = smul.addr %s249, 4
        %s251 = smul.addr %s250, 2
        %s252 = scalar_lea.vmem %s5, %s251
        %v254 = vld [vmem:[%s242] sm:$0xff]
        %v255 = vld [vmem:[%s242 + $0x8] sm:$0xff]
        %v256 = vld [vmem:[%s242 + $0x10] sm:$0xff]
        %v257 = vld [vmem:[%s242 + $0x18] sm:$0xff]
        %v258 = vld [vmem:[%s242 + $0x20] sm:$0xff]
        %v259 = vld [vmem:[%s242 + $0x28] sm:$0xff]
        %v260 = vld [vmem:[%s242 + $0x30] sm:$0xff]
        %v261 = vld [vmem:[%s242 + $0x38] sm:$0xff]
        %v262 = vld [vmem:[%s1] sm:$0xf]
        %v263 = vld [vmem:[%s1 + $0x4] sm:$0xf]
        %v264 = vld [vmem:[%s1 + $0x8] sm:$0xf]
        %v265 = vld [vmem:[%s1 + $0xc] sm:$0xf]
        %v266 = vld [vmem:[%s1 + $0x10] sm:$0xf]
        %v267 = vld [vmem:[%s1 + $0x14] sm:$0xf]
        %v268 = vld [vmem:[%s1 + $0x18] sm:$0xf]
        %v269 = vld [vmem:[%s1 + $0x1c] sm:$0xf]
        %v270 = vld [vmem:[%s2] sm:$0xff]
        %v271 = vld [vmem:[%s2 + $0x8] sm:$0xff]
        %v272 = vld [vmem:[%s2 + $0x10] sm:$0xff]
        %v273 = vld [vmem:[%s2 + $0x18] sm:$0xff]
        %v274 = vld [vmem:[%s2 + $0x20] sm:$0xff]
        %v275 = vld [vmem:[%s2 + $0x28] sm:$0xff]
        %v276 = vld [vmem:[%s2 + $0x30] sm:$0xff]
        %v277 = vld [vmem:[%s2 + $0x38] sm:$0xff]
        %279 = vset.pattern.permute.xlu0 0
        %280 = vperm.xlu0 %279, %v270
        %v281 = vpop.permute.xlu0 %280
        %284 = vset.pattern.permute.xlu0 0
        %285 = vperm.xlu0 %284, %v271
        %v286 = vpop.permute.xlu0 %285
        %289 = vset.pattern.permute.xlu0 0
        %290 = vperm.xlu0 %289, %v272
        %v291 = vpop.permute.xlu0 %290
        %294 = vset.pattern.permute.xlu0 0
        %295 = vperm.xlu0 %294, %v273
        %v296 = vpop.permute.xlu0 %295
        %299 = vset.pattern.permute.xlu0 0
        %300 = vperm.xlu0 %299, %v274
        %v301 = vpop.permute.xlu0 %300
        %304 = vset.pattern.permute.xlu0 0
        %305 = vperm.xlu0 %304, %v275
        %v306 = vpop.permute.xlu0 %305
        %309 = vset.pattern.permute.xlu0 0
        %310 = vperm.xlu0 %309, %v276
        %v311 = vpop.permute.xlu0 %310
        %314 = vset.pattern.permute.xlu0 0
        %315 = vperm.xlu0 %314, %v277
        %v316 = vpop.permute.xlu0 %315
        %v326 = vunpack.c.l.b16 %v262
        %v327 = vunpack.c.l.b16 %v263
        %v328 = vunpack.c.l.b16 %v264
        %v329 = vunpack.c.l.b16 %v265
        %v330 = vunpack.c.l.b16 %v266
        %v331 = vunpack.c.l.b16 %v267
        %v332 = vunpack.c.l.b16 %v268
        %v333 = vunpack.c.l.b16 %v269
        %v334 = vpack.c.b16 %v327, %v326
        %v335 = vpack.c.b16 %v329, %v328
        %v336 = vpack.c.b16 %v331, %v330
        %v337 = vpack.c.b16 %v333, %v332
        %v346 = vunpack.c.l.b16 %v254
        %v347 = vunpack.c.h.b16 %v254
        %v348 = vunpack.c.l.b16 %v255
        %v349 = vunpack.c.h.b16 %v255
        %v350 = vunpack.c.l.b16 %v256
        %v351 = vunpack.c.h.b16 %v256
        %v352 = vunpack.c.l.b16 %v257
        %v353 = vunpack.c.h.b16 %v257
        %v354 = vunpack.c.l.b16 %v258
        %v355 = vunpack.c.h.b16 %v258
        %v356 = vunpack.c.l.b16 %v259
        %v357 = vunpack.c.h.b16 %v259
        %v358 = vunpack.c.l.b16 %v260
        %v359 = vunpack.c.h.b16 %v260
        %v360 = vunpack.c.l.b16 %v261
        %v361 = vunpack.c.h.b16 %v261
        %v362 = vpack.c.b16 %v350, %v346
        %v363 = vpack.c.b16 %v351, %v347
        %v364 = vpack.c.b16 %v352, %v348
        %v365 = vpack.c.b16 %v353, %v349
        %v366 = vpack.c.b16 %v358, %v354
        %v367 = vpack.c.b16 %v359, %v355
        %v368 = vpack.c.b16 %v360, %v356
        %v369 = vpack.c.b16 %v361, %v357
        %vm378 = vcmask 261120
        %v380 = vsel %vm378, %v334, 0
        %v383 = vsel %vm378, %v335, 0
        %v386 = vsel %vm378, %v336, 0
        %v389 = vsel %vm378, %v337, 0
        %391 = vmatpush.bf16.msra.mxu0 0
        %392 = vmatpush.bf16.msra.mxu0 0
        %393 = vmatpush.bf16.msra.mxu0 0
        %394 = vmatpush.bf16.msra.mxu0 0
        %395 = vmatpush.bf16.msra.mxu0 0
        %396 = vmatpush.bf16.msra.mxu0 0
        %397 = vmatpush.bf16.msra.mxu0 %v366
        %398 = vmatpush.bf16.msra.mxu0 %v362
        %399 = vmatmul.bf16.gmra.mxu0 %v380
        %v400 = vpop.f32.mrf.mxu0
        %v401 = vadd.f32 %v281, %v400
        %v402 = vpop.f32.mrf.mxu0
        %v403 = vadd.f32 %v286, %v402
        %404 = vmatmul.bf16.gmra.mxu0 %v383
        %v405 = vpop.f32.mrf.mxu0
        %v406 = vadd.f32 %v291, %v405
        %v407 = vpop.f32.mrf.mxu0
        %v408 = vadd.f32 %v296, %v407
        %409 = vmatmul.bf16.gmra.mxu0 %v386
        %v410 = vpop.f32.mrf.mxu0
        %v411 = vadd.f32 %v301, %v410
        %v412 = vpop.f32.mrf.mxu0
        %v413 = vadd.f32 %v306, %v412
        %414 = vmatmul.bf16.gmra.mxu0 %v389
        %v415 = vpop.f32.mrf.mxu0
        %v416 = vadd.f32 %v311, %v415
        %v417 = vpop.f32.mrf.mxu0
        %v418 = vadd.f32 %v316, %v417
        %419 = vdwg.mxu0
        %420 = vmatpush.bf16.msra.mxu0 0
        %421 = vmatpush.bf16.msra.mxu0 0
        %422 = vmatpush.bf16.msra.mxu0 0
        %423 = vmatpush.bf16.msra.mxu0 0
        %424 = vmatpush.bf16.msra.mxu0 0
        %425 = vmatpush.bf16.msra.mxu0 0
        %426 = vmatpush.bf16.msra.mxu0 %v367
        %427 = vmatpush.bf16.msra.mxu0 %v363
        %428 = vmatmul.bf16.gmra.mxu0 %v380
        %v429 = vpop.f32.mrf.mxu0
        %v430 = vadd.f32 %v281, %v429
        %v431 = vpop.f32.mrf.mxu0
        %v432 = vadd.f32 %v286, %v431
        %433 = vmatmul.bf16.gmra.mxu0 %v383
        %v434 = vpop.f32.mrf.mxu0
        %v435 = vadd.f32 %v291, %v434
        %v436 = vpop.f32.mrf.mxu0
        %v437 = vadd.f32 %v296, %v436
        %438 = vmatmul.bf16.gmra.mxu0 %v386
        %v439 = vpop.f32.mrf.mxu0
        %v440 = vadd.f32 %v301, %v439
        %v441 = vpop.f32.mrf.mxu0
        %v442 = vadd.f32 %v306, %v441
        %443 = vmatmul.bf16.gmra.mxu0 %v389
        %v444 = vpop.f32.mrf.mxu0
        %v445 = vadd.f32 %v311, %v444
        %v446 = vpop.f32.mrf.mxu0
        %v447 = vadd.f32 %v316, %v446
        %448 = vdwg.mxu0
        %449 = vmatpush.bf16.msra.mxu0 0
        %450 = vmatpush.bf16.msra.mxu0 0
        %451 = vmatpush.bf16.msra.mxu0 0
        %452 = vmatpush.bf16.msra.mxu0 0
        %453 = vmatpush.bf16.msra.mxu0 0
        %454 = vmatpush.bf16.msra.mxu0 0
        %455 = vmatpush.bf16.msra.mxu0 %v368
        %456 = vmatpush.bf16.msra.mxu0 %v364
        %457 = vmatmul.bf16.gmra.mxu0 %v380
        %v458 = vpop.f32.mrf.mxu0
        %v459 = vadd.f32 %v281, %v458
        %v460 = vpop.f32.mrf.mxu0
        %v461 = vadd.f32 %v286, %v460
        %462 = vmatmul.bf16.gmra.mxu0 %v383
        %v463 = vpop.f32.mrf.mxu0
        %v464 = vadd.f32 %v291, %v463
        %v465 = vpop.f32.mrf.mxu0
        %v466 = vadd.f32 %v296, %v465
        %467 = vmatmul.bf16.gmra.mxu0 %v386
        %v468 = vpop.f32.mrf.mxu0
        %v469 = vadd.f32 %v301, %v468
        %v470 = vpop.f32.mrf.mxu0
        %v471 = vadd.f32 %v306, %v470
        %472 = vmatmul.bf16.gmra.mxu0 %v389
        %v473 = vpop.f32.mrf.mxu0
        %v474 = vadd.f32 %v311, %v473
        %v475 = vpop.f32.mrf.mxu0
        %v476 = vadd.f32 %v316, %v475
        %477 = vdwg.mxu0
        %478 = vmatpush.bf16.msra.mxu0 0
        %479 = vmatpush.bf16.msra.mxu0 0
        %480 = vmatpush.bf16.msra.mxu0 0
        %481 = vmatpush.bf16.msra.mxu0 0
        %482 = vmatpush.bf16.msra.mxu0 0
        %483 = vmatpush.bf16.msra.mxu0 0
        %484 = vmatpush.bf16.msra.mxu0 %v369
        %485 = vmatpush.bf16.msra.mxu0 %v365
        %486 = vmatmul.bf16.gmra.mxu0 %v380
        %v487 = vpop.f32.mrf.mxu0
        %v488 = vadd.f32 %v281, %v487
        %v489 = vpop.f32.mrf.mxu0
        %v490 = vadd.f32 %v286, %v489
        %491 = vmatmul.bf16.gmra.mxu0 %v383
        %v492 = vpop.f32.mrf.mxu0
        %v493 = vadd.f32 %v291, %v492
        %v494 = vpop.f32.mrf.mxu0
        %v495 = vadd.f32 %v296, %v494
        %496 = vmatmul.bf16.gmra.mxu0 %v386
        %v497 = vpop.f32.mrf.mxu0
        %v498 = vadd.f32 %v301, %v497
        %v499 = vpop.f32.mrf.mxu0
        %v500 = vadd.f32 %v306, %v499
        %501 = vmatmul.bf16.gmra.mxu0 %v389
        %v502 = vpop.f32.mrf.mxu0
        %v503 = vadd.f32 %v311, %v502
        %v504 = vpop.f32.mrf.mxu0
        %v505 = vadd.f32 %v316, %v504
        %506 = vdwg.mxu0
        %v507 = vmax.f32 %v401, 0.0
        %v508 = vmax.f32 %v430, 0.0
        %v509 = vmax.f32 %v459, 0.0
        %v510 = vmax.f32 %v488, 0.0
        %v511 = vmax.f32 %v403, 0.0
        %v512 = vmax.f32 %v432, 0.0
        %v513 = vmax.f32 %v461, 0.0
        %v514 = vmax.f32 %v490, 0.0
        %v515 = vmax.f32 %v406, 0.0
        %v516 = vmax.f32 %v435, 0.0
        %v517 = vmax.f32 %v464, 0.0
        %v518 = vmax.f32 %v493, 0.0
        %v519 = vmax.f32 %v408, 0.0
        %v520 = vmax.f32 %v437, 0.0
        %v521 = vmax.f32 %v466, 0.0
        %v522 = vmax.f32 %v495, 0.0
        %v523 = vmax.f32 %v411, 0.0
        %v524 = vmax.f32 %v440, 0.0
        %v525 = vmax.f32 %v469, 0.0
        %v526 = vmax.f32 %v498, 0.0
        %v527 = vmax.f32 %v413, 0.0
        %v528 = vmax.f32 %v442, 0.0
        %v529 = vmax.f32 %v471, 0.0
        %v530 = vmax.f32 %v500, 0.0
        %v531 = vmax.f32 %v416, 0.0
        %v532 = vmax.f32 %v445, 0.0
        %v533 = vmax.f32 %v474, 0.0
        %v534 = vmax.f32 %v503, 0.0
        %v535 = vmax.f32 %v418, 0.0
        %v536 = vmax.f32 %v447, 0.0
        %v537 = vmax.f32 %v476, 0.0
        %v538 = vmax.f32 %v505, 0.0
        %539 = vst [vmem:[%s247] sm:$0xff] %v523
        %540 = vst [vmem:[%s247 + $0x8] sm:$0xff] %v524
        %541 = vst [vmem:[%s247 + $0x10] sm:$0xff] %v525
        %542 = vst [vmem:[%s247 + $0x18] sm:$0xff] %v526
        %543 = vst [vmem:[%s247 + $0x20] sm:$0xff] %v527
        %544 = vst [vmem:[%s247 + $0x28] sm:$0xff] %v528
        %545 = vst [vmem:[%s247 + $0x30] sm:$0xff] %v529
        %546 = vst [vmem:[%s247 + $0x38] sm:$0xff] %v530
        %547 = vst [vmem:[%s247 + $0x40] sm:$0xff] %v531
        %548 = vst [vmem:[%s247 + $0x48] sm:$0xff] %v532
        %549 = vst [vmem:[%s247 + $0x50] sm:$0xff] %v533
        %550 = vst [vmem:[%s247 + $0x58] sm:$0xff] %v534
        %551 = vst [vmem:[%s247 + $0x60] sm:$0xff] %v535
        %552 = vst [vmem:[%s247 + $0x68] sm:$0xff] %v536
        %553 = vst [vmem:[%s247 + $0x70] sm:$0xff] %v537
        %554 = vst [vmem:[%s247 + $0x78] sm:$0xff] %v538
        %v555 = vld [vmem:[#allocation2] sm:$0x3]
        %vm556 = vcmask 523264
        %v558 = vsel %vm556, %v555, 0
        %560 = vmatpush.msra.mxu0 0.0
        %561 = vmatpush.msra.mxu0 0.0
        %562 = vmatpush.msra.mxu0 0.0
        %563 = vmatpush.msra.mxu0 0.0
        %564 = vmatpush.msra.mxu0 0.0
        %565 = vmatpush.msra.mxu0 0.0
        %566 = vmatpush.msra.mxu0 0.0
        %567 = vmatpush.msra.mxu0 0.0
        %568 = vmatpush.msra.mxu0 %v535
        %569 = vmatpush.msra.mxu0 %v531
        %570 = vmatpush.msra.mxu0 %v527
        %571 = vmatpush.msra.mxu0 %v523
        %572 = vmatpush.msra.mxu0 %v519
        %573 = vmatpush.msra.mxu0 %v515
        %574 = vmatpush.msra.mxu0 %v511
        %575 = vmatpush.msra.mxu0 %v507
        %576 = vmatmul.f32.gmra.mxu0 %v558
        %v577 = vpop.f32.mrf.mxu0
        %v578 = vadd.f32 0.0, %v577
        %579 = vdwg.mxu0
        %580 = vmatpush.msra.mxu0 0.0
        %581 = vmatpush.msra.mxu0 0.0
        %582 = vmatpush.msra.mxu0 0.0
        %583 = vmatpush.msra.mxu0 0.0
        %584 = vmatpush.msra.mxu0 0.0
        %585 = vmatpush.msra.mxu0 0.0
        %586 = vmatpush.msra.mxu0 0.0
        %587 = vmatpush.msra.mxu0 0.0
        %588 = vmatpush.msra.mxu0 %v536
        %589 = vmatpush.msra.mxu0 %v532
        %590 = vmatpush.msra.mxu0 %v528
        %591 = vmatpush.msra.mxu0 %v524
        %592 = vmatpush.msra.mxu0 %v520
        %593 = vmatpush.msra.mxu0 %v516
        %594 = vmatpush.msra.mxu0 %v512
        %595 = vmatpush.msra.mxu0 %v508
        %596 = vmatmul.f32.gmra.mxu0 %v558
        %v597 = vpop.f32.mrf.mxu0
        %v598 = vadd.f32 0.0, %v597
        %599 = vdwg.mxu0
        %600 = vmatpush.msra.mxu0 0.0
        %601 = vmatpush.msra.mxu0 0.0
        %602 = vmatpush.msra.mxu0 0.0
        %603 = vmatpush.msra.mxu0 0.0
        %604 = vmatpush.msra.mxu0 0.0
        %605 = vmatpush.msra.mxu0 0.0
        %606 = vmatpush.msra.mxu0 0.0
        %607 = vmatpush.msra.mxu0 0.0
        %608 = vmatpush.msra.mxu0 %v537
        %609 = vmatpush.msra.mxu0 %v533
        %610 = vmatpush.msra.mxu0 %v529
        %611 = vmatpush.msra.mxu0 %v525
        %612 = vmatpush.msra.mxu0 %v521
        %613 = vmatpush.msra.mxu0 %v517
        %614 = vmatpush.msra.mxu0 %v513
        %615 = vmatpush.msra.mxu0 %v509
        %616 = vmatmul.f32.gmra.mxu0 %v558
        %v617 = vpop.f32.mrf.mxu0
        %v618 = vadd.f32 0.0, %v617
        %619 = vdwg.mxu0
        %620 = vmatpush.msra.mxu0 0.0
        %621 = vmatpush.msra.mxu0 0.0
        %622 = vmatpush.msra.mxu0 0.0
        %623 = vmatpush.msra.mxu0 0.0
        %624 = vmatpush.msra.mxu0 0.0
        %625 = vmatpush.msra.mxu0 0.0
        %626 = vmatpush.msra.mxu0 0.0
        %627 = vmatpush.msra.mxu0 0.0
        %628 = vmatpush.msra.mxu0 %v538
        %629 = vmatpush.msra.mxu0 %v534
        %630 = vmatpush.msra.mxu0 %v530
        %631 = vmatpush.msra.mxu0 %v526
        %632 = vmatpush.msra.mxu0 %v522
        %633 = vmatpush.msra.mxu0 %v518
        %634 = vmatpush.msra.mxu0 %v514
        %635 = vmatpush.msra.mxu0 %v510
        %636 = vmatmul.f32.gmra.mxu0 %v558
        %v637 = vpop.f32.mrf.mxu0
        %v638 = vadd.f32 0.0, %v637
        %639 = vdwg.mxu0
        %vm640 = vcmask 1041408
        %v641 = vsel %vm640, %v578, -inf
        %v642 = vsel %vm640, %v598, -inf
        %v643 = vsel %vm640, %v618, -inf
        %v644 = vsel %vm640, %v638, -inf
        %v645 = vmax.f32 %v641, %v642
        %v646 = vmax.f32 %v643, %v644
        %v647 = vmax.f32 %v645, %v646
        %648 = vmax.xlane.f32.xlu0 %v647
        %v649 = vpop.xlane.xlu0 %648
        %v650 = vsub.f32 %v578, %v649
        %v651 = vsub.f32 %v598, %v649
        %v652 = vsub.f32 %v618, %v649
        %v653 = vsub.f32 %v638, %v649
        %v654 = vmul.f32 %v650, 1.442695
        %v655 = vpow.pop %v654
        %v656 = vmul.f32 %v651, 1.442695
        %v657 = vpow.pop %v656
        %v658 = vmul.f32 %v652, 1.442695
        %v659 = vpow.pop %v658
        %v660 = vmul.f32 %v653, 1.442695
        %v661 = vpow.pop %v660
        %v662 = vsel %vm640, %v655, 0.0
        %v663 = vsel %vm640, %v657, 0.0
        %v664 = vadd.f32 %v662, %v663
        %v665 = vsel %vm640, %v659, 0.0
        %v666 = vadd.f32 %v664, %v665
        %v667 = vsel %vm640, %v661, 0.0
        %v668 = vadd.f32 %v666, %v667
        %669 = vadd.xlane.f32.xlu0 %v668
        %v670 = vpop.xlane.xlu0 %669
        %v671 = vrcp.pop %v670
        %v672 = vmul.f32 %v670, %v671
        %v673 = vsub.f32 1.0, %v672
        %v674 = vmul.f32 %v671, %v673
        %v675 = vadd.f32 %v671, %v674
        %vm676 = vweird.f32 %v670
        %vm677 = vweird.f32 %v671
        %vm678 = vmor %vm676, %vm677
        %v679 = vsel %vm678, %v671, %v675
        %v680 = vand.u32 2147483647, %v670
        %vm681 = vcmp.eq.f32.partialorder %v680, 8.507059e+37
        %v682 = vand.u32 %v670, 2147483648
        %v683 = vor.u32 1.1754944e-38, %v682
        %v684 = vsel %vm681, %v683, %v679
        %v685 = vmul.f32 %v655, %v684
        %v686 = vmul.f32 %v657, %v684
        %v687 = vmul.f32 %v659, %v684
        %v688 = vmul.f32 %v661, %v684
        %v689 = vsub.f32 0.0, %v649
        %v690 = vmul.f32 %v689, 1.442695
        %v691 = vpow.pop %v690
        %v692 = vadd.f32 %v685, %v691
        %v693 = vadd.f32 %v686, %v691
        %v694 = vadd.f32 %v687, %v691
        %v695 = vadd.f32 %v688, %v691
        %vm696 = vcmp.gt.f32.partialorder %v692, 0.0029296875
        %vm697 = vcmp.gt.f32.partialorder %v693, 0.0029296875
        %vm698 = vcmp.gt.f32.partialorder %v694, 0.0029296875
        %vm699 = vcmp.gt.f32.partialorder %v695, 0.0029296875
        %v700 = vsel %vm696, 1, 0
        %v701 = vsel %vm697, 1, 0
        %v702 = vsel %vm698, 1, 0
        %v703 = vsel %vm699, 1, 0
        %v704 = vrot.slane %v701, 6
        %v705 = vrot.slane %v702, 4
        %v706 = vrot.slane %v703, 2
        %v707 = vsel %vm640, %v700, %v704
        %vm708 = vcmask 1045508
        %v709 = vsel %vm708, %v705, %v706
        %vm710 = vcmask 1043456
        %v711 = vsel %vm710, %v707, %v709
        %712 = vst [vmem:[%s252] sm:$0xff] %v711
        %p713 = scmp.lt.s32.totalorder %s18, 1
        %s714 = scalar_select %p713, %s18, 1
        %s715 = smul.addr %s714, 16
        %s716 = smul.addr %s715, 8
        %s717 = scalar_lea.vmem %s4, %s716
        %p718 = scmp.lt.s32.totalorder %s18, 1
        %s719 = scalar_select %p718, %s18, 1
        %s720 = smul.addr %s719, 4
        %s721 = smul.addr %s720, 2
        %s722 = scalar_lea.vmem %s5, %s721
        // Predicated region
        $region41: #{forward_matchKV.1} parent=35 // pred_check
          %p723 = pneg %p125
        $region42: #{forward_matchKV.1} parent=35 // pred_check_branch
          %725 = sbr.rel (%p723) target = $region44
        $region43: #{forward_matchKV.1} parent=35 // pred_region
          _
        $region44: #{forward_matchKV.1} parent=35 // pred_fallthru
          _
        // Predicated region
        $region45: #{forward_matchKV.1} parent=35 // pred_check
          %p726 = pneg %p151
        $region46: #{forward_matchKV.1} parent=35 // pred_check_branch
          %728 = sbr.rel (%p726) target = $region48
        $region47: #{forward_matchKV.1} parent=35 // pred_region
          _
        $region48: #{forward_matchKV.1} parent=35 // pred_fallthru
          _
      $region36: #{forward_matchKV.1} parent=5 // pred_fallthru
        _
      %p729 = scmp.le.s32.totalorder 2, %s13
      // Predicated region
      $region49: #{forward_matchKV.1} parent=5 // pred_check
        %p730 = pneg %p729
      $region50: #{forward_matchKV.1} parent=5 // pred_check_branch
        %732 = sbr.rel (%p730) target = $region52
      $region51: #{forward_matchKV.1} parent=5 // pred_region
        %s733 = ssub.s32 %s13, 2
        // Predicated region
        $region53: #{forward_matchKV.1} parent=51 // pred_check
          %p734 = pneg %p131
        $region54: #{forward_matchKV.1} parent=51 // pred_check_branch
          %736 = sbr.rel (%p734) target = $region56
        $region55: #{forward_matchKV.1} parent=51 // pred_region
          %p737 = scmp.lt.s32.totalorder %s19, 1
          %s738 = scalar_select %p737, %s19, 1
          %s739 = smul.addr %s738, 16
          %s740 = smul.addr %s739, 8
          %s741 = scalar_lea.vmem %s4, %s740
        $region56: #{forward_matchKV.1} parent=51 // pred_fallthru
          _
        // Predicated region
        $region57: #{forward_matchKV.1} parent=51 // pred_check
          %p742 = pneg %p157
        $region58: #{forward_matchKV.1} parent=51 // pred_check_branch
          %744 = sbr.rel (%p742) target = $region60
        $region59: #{forward_matchKV.1} parent=51 // pred_region
          %p745 = scmp.lt.s32.totalorder %s19, 1
          %s746 = scalar_select %p745, %s19, 1
          %s747 = smul.addr %s746, 4
          %s748 = smul.addr %s747, 2
          %s749 = scalar_lea.vmem %s5, %s748
        $region60: #{forward_matchKV.1} parent=51 // pred_fallthru
          _
      $region52: #{forward_matchKV.1} parent=5 // pred_fallthru
        _
    $region6: #{forward_matchKV.1} parent=1 // loop_footer
      %s17 = sadd.s32 1, %s13
    $region7: #{forward_matchKV.1} parent=1 // loop_footer_branch
      %12 = sbr.rel target = $region3
    $region8: #{forward_matchKV.1} parent=1 // loop_exit
      _
    %750 = vsyncpa [#allocation3], 1
    %s751 = scalar_lea.sflag [#allocation3], 1
    %752 = vsyncpa %s751, 1

</llo_original>
